<compile_context>
chip_gen: v6e
topology: v6e:2x2x1
jax: 0.10.0
libtpu: 0.0.40
codegen_flags: <defaults>
</compile_context>

<pallas_src>
import jax
import jax.numpy as jnp
from jax.experimental import pallas as pl
from jax.experimental.pallas import tpu as pltpu


def _round_up(x, m):
    return ((x + m - 1) // m) * m


def _pad_cast(x, rows, cols, dtype):
    """Cast (if needed) and zero-pad to (rows, cols); no-op if already there."""
    if x.dtype != jnp.dtype(dtype):
        x = x.astype(dtype)
    pr, pc = rows - x.shape[0], cols - x.shape[1]
    if pr or pc:
        x = jnp.pad(x, ((0, pr), (0, pc)))
    return x


def _gated_fus_kernel(imu_ref, rgb_ref, pose_ref,
                      w1a_ref, w1b_ref, b1_ref,
                      w2a_ref, w2b_ref, b2_ref,
                      out_ref):
    # Matmuls run in the weight dtype (bf16 fast path on all generations) with
    # f32 MXU accumulation; all element-wise gate/blend math is f32.
    mm_dt = w1a_ref.dtype

    imu = imu_ref[...]
    rgb = rgb_ref[...]
    pose = pose_ref[...]
    imu_f = imu.astype(jnp.float32)
    rgb_f = rgb.astype(jnp.float32)
    pose_f = pose.astype(jnp.float32)

    # gate_imu_rgb: sigmoid(Linear(cat([imu, rgb], -1)))
    logits1 = (jnp.dot(imu.astype(mm_dt), w1a_ref[...],
                       preferred_element_type=jnp.float32)
               + jnp.dot(rgb.astype(mm_dt), w1b_ref[...],
                         preferred_element_type=jnp.float32)
               + b1_ref[...])                                   # bias is f32
    g1 = jax.nn.sigmoid(logits1)
    fused = rgb_f + g1 * (imu_f - rgb_f)                        # g1*imu + (1-g1)*rgb

    # gate_fused_pose: sigmoid(Linear(cat([fused, pose], -1)))
    logits2 = (jnp.dot(fused.astype(mm_dt), w2a_ref[...],
                       preferred_element_type=jnp.float32)
               + jnp.dot(pose.astype(mm_dt), w2b_ref[...],
                         preferred_element_type=jnp.float32)
               + b2_ref[...])                                   # bias is f32
    g2 = jax.nn.sigmoid(logits2)
    fused_all = pose_f + g2 * (fused - pose_f)                  # g2*fused + (1-g2)*pose

    out_ref[...] = fused_all.astype(out_ref.dtype)


def _vmem_capacity_bytes():
    try:
        return int(pltpu.get_tpu_info().vmem_capacity_bytes)
    except Exception:
        return 64 * (1 << 20)   # conservative (v7x per-TC)


def _choose_batch_tile(B, Fp, act_itemsize, batch_tile):
    B8 = _round_up(B, 8)
    if batch_tile is not None:
        return min(_round_up(batch_tile, 8), B8)
    # Target ~4 MiB of streamed activation traffic (3 in + 1 out) per step.
    target_bytes = 4 << 20
    TB = _round_up(max(target_bytes // (4 * Fp * act_itemsize), 1), 8)
    TB = min(max(TB, 256), 2048)
    if B8 < TB:
        TB = B8
    # Guarantee >= 2 grid steps when possible so the "parallel" axis splits
    # across v7x's two TensorCores (no effect on single-TC v5e/v6e).
    if _round_up(B, TB) == TB and B8 > 8:
        TB = _round_up(-(-B8 // 2), 8)
    return TB


def gated_fus_forward(imu, rgb, pose, params, *, batch_tile=None,
                      weight_dtype=None, act_dtype=None):
    """imu, rgb, pose: [B, F]. params: dict of split weights/biases.

    Pads F to a multiple of 128 (lane-dense stores) and B to a multiple of the
    batch tile; un-pads before returning.  `weight_dtype`/`act_dtype` (e.g.
    bfloat16) select the MXU operand dtype and the streamed-activation dtype.
    """
    B, F = imu.shape
    orig_dt = imu.dtype
    Fp = _round_up(F, 128)

    w_dt = jnp.dtype(weight_dtype) if weight_dtype is not None else params["w1a"].dtype
    a_dt = jnp.dtype(act_dtype) if act_dtype is not None else orig_dt

    TB = _choose_batch_tile(B, Fp, jnp.dtype(a_dt).itemsize, batch_tile)
    Bp = _round_up(B, TB)
    grid = (Bp // TB,)

    # Zero-padded weights; padded rows/cols contribute nothing to real lanes,
    # padded output lanes give sigmoid(0)=0.5 blending two zeros -> 0.
    w1a = _pad_cast(params["w1a"], Fp, Fp, w_dt)
    w1b = _pad_cast(params["w1b"], Fp, Fp, w_dt)
    w2a = _pad_cast(params["w2a"], Fp, Fp, w_dt)
    w2b = _pad_cast(params["w2b"], Fp, Fp, w_dt)
    b1 = _pad_cast(params["b1"], 1, Fp, jnp.float32)   # biases stay f32
    b2 = _pad_cast(params["b2"], 1, Fp, jnp.float32)

    # Pad + cast fused; no-op when F is already a multiple of 128 and B of TB.
    imu_p = _pad_cast(imu, Bp, Fp, a_dt)
    rgb_p = _pad_cast(rgb, Bp, Fp, a_dt)
    pose_p = _pad_cast(pose, Bp, Fp, a_dt)

    act_spec = pl.BlockSpec((TB, Fp), lambda i: (i, 0))   # streamed, double-buffered
    # Constant index_map -> resident in VMEM; single buffer (no waste).
    w_spec = pl.BlockSpec((Fp, Fp), lambda i: (0, 0), pipeline_mode=pl.Buffered(1))
    b_spec = pl.BlockSpec((1, Fp), lambda i: (0, 0), pipeline_mode=pl.Buffered(1))

    # VMEM budget: single-buffered weights/biases + double-buffered activations.
    wt_bytes = 4 * Fp * Fp * jnp.dtype(w_dt).itemsize + 2 * Fp * 4
    act_bytes = 4 * 2 * TB * Fp * jnp.dtype(a_dt).itemsize   # 3 in + 1 out, 2 bufs
    cap = _vmem_capacity_bytes()
    vmem_limit = int(min(max(wt_bytes + act_bytes + (4 << 20), 16 << 20),
                         int(0.85 * cap)))

    cost = pl.CostEstimate(
        flops=8 * Bp * Fp * Fp,                               # 4 matmuls
        transcendentals=2 * Bp * Fp,                          # 2 sigmoids
        bytes_accessed=4 * Bp * Fp * jnp.dtype(a_dt).itemsize + wt_bytes,
    )

    out = pl.pallas_call(
        _gated_fus_kernel,
        out_shape=jax.ShapeDtypeStruct((Bp, Fp), a_dt),
        grid=grid,
        in_specs=[
            act_spec, act_spec, act_spec,     # imu, rgb, pose
            w_spec, w_spec, b_spec,           # W1a, W1b, b1
            w_spec, w_spec, b_spec,           # W2a, W2b, b2
        ],
        out_specs=act_spec,
        compiler_params=pltpu.CompilerParams(
            dimension_semantics=("parallel",),
            vmem_limit_bytes=vmem_limit,
        ),
        cost_estimate=cost,
    )(imu_p, rgb_p, pose_p, w1a, w1b, b1, w2a, w2b, b2)

    out = out[:B, :F]
    if out.dtype != orig_dt:
        out = out.astype(orig_dt)
    return out


def init_params(key, feature_size):
    """Init mimicking PyTorch Linear default (uniform +-1/sqrt(fan_in))."""
    F = feature_size
    bound = 1.0 / jnp.sqrt(2.0 * F)
    k1, k2, k3, k4 = jax.random.split(key, 4)
    # PyTorch weight layout is (out=F, in=2F); kernel consumes x @ W_half.T,
    # so store the two transposed halves directly as (F, F).
    w1 = jax.random.uniform(k1, (F, 2 * F), jnp.float32, -bound, bound)
    b1 = jax.random.uniform(k2, (F,), jnp.float32, -bound, bound)
    w2 = jax.random.uniform(k3, (F, 2 * F), jnp.float32, -bound, bound)
    b2 = jax.random.uniform(k4, (F,), jnp.float32, -bound, bound)
    return {
        "w1a": jnp.transpose(w1[:, :F]),   # (F, F): multiplies imu
        "w1b": jnp.transpose(w1[:, F:]),   # (F, F): multiplies rgb
        "b1": b1.reshape(1, F),
        "w2a": jnp.transpose(w2[:, :F]),   # (F, F): multiplies fused_imu_rgb
        "w2b": jnp.transpose(w2[:, F:]),   # (F, F): multiplies pose
        "b2": b2.reshape(1, F),
    }


def _reference(imu, rgb, pose, params):
    # Pure-JAX reference replicating the PyTorch forward exactly (f32).
    w1 = jnp.concatenate([params["w1a"], params["w1b"]], axis=0)  # (2F, F)
    w2 = jnp.concatenate([params["w2a"], params["w2b"]], axis=0)
    g1 = jax.nn.sigmoid(jnp.concatenate([imu, rgb], -1) @ w1 + params["b1"])
    fused = g1 * imu + (1 - g1) * rgb
    g2 = jax.nn.sigmoid(jnp.concatenate([fused, pose], -1) @ w2 + params["b2"])
    return g2 * fused + (1 - g2) * pose


if __name__ == "__main__":
    key = jax.random.PRNGKey(0)

    # --- small shape (matches the module's intent): B=8, feature_size=32 ----
    B, F = 8, 32
    k_imu, k_rgb, k_pose, k_par = jax.random.split(key, 4)
    imu = jax.random.normal(k_imu, (B, F), jnp.float32)
    rgb = jax.random.normal(k_rgb, (B, F), jnp.float32)
    pose = jax.random.normal(k_pose, (B, F), jnp.float32)
    params = init_params(k_par, F)

    out = gated_fus_forward(imu, rgb, pose, params)
    jax.block_until_ready(out)
    ref = _reference(imu, rgb, pose, params)
    assert out.shape == (B, F)
    assert jnp.allclose(out, ref, atol=1e-5, rtol=1e-5), "f32 mismatch vs reference"

    # bf16 weight + activation fast path (all generations); looser tolerance.
    out_bf16 = gated_fus_forward(imu, rgb, pose, params,
                                 weight_dtype=jnp.bfloat16, act_dtype=jnp.bfloat16)
    jax.block_until_ready(out_bf16)
    assert jnp.allclose(out_bf16, ref, atol=5e-2, rtol=5e-2), "bf16 mismatch vs reference"

    # --- odd shapes exercising padding + multi-step batch grid ---------------
    B2, F2 = 40, 96  # pads to Fp=128; auto TB -> 2 grid steps (Bp=48, TB=24)
    k_imu2, k_rgb2, k_pose2, k_par2 = jax.random.split(jax.random.PRNGKey(1), 4)
    imu2 = jax.random.normal(k_imu2, (B2, F2), jnp.float32)
    rgb2 = jax.random.normal(k_rgb2, (B2, F2), jnp.float32)
    pose2 = jax.random.normal(k_pose2, (B2, F2), jnp.float32)
    params2 = init_params(k_par2, F2)

    out2 = gated_fus_forward(imu2, rgb2, pose2, params2)
    jax.block_until_ready(out2)
    ref2 = _reference(imu2, rgb2, pose2, params2)
    assert out2.shape == (B2, F2)
    assert jnp.allclose(out2, ref2, atol=1e-5, rtol=1e-5), "padded/grid mismatch vs reference"

    # explicit batch_tile still honored (3-step grid)
    out3 = gated_fus_forward(imu2, rgb2, pose2, params2, batch_tile=16)
    jax.block_until_ready(out3)
    assert jnp.allclose(out3, ref2, atol=1e-5, rtol=1e-5), "explicit-tile mismatch vs reference"

    print("KERNEL_OK")
</pallas_src>

<mosaic_0001>
module attributes {stable_mosaic.version = 11 : i64} {
  func.func @_gated_fus_kernel(%arg0: i32, %arg1: memref<8x128xf32, #tpu.memory_space<vmem>>, %arg2: memref<8x128xf32, #tpu.memory_space<vmem>>, %arg3: memref<8x128xf32, #tpu.memory_space<vmem>>, %arg4: memref<128x128xf32, #tpu.memory_space<vmem>>, %arg5: memref<128x128xf32, #tpu.memory_space<vmem>>, %arg6: memref<1x128xf32, #tpu.memory_space<vmem>>, %arg7: memref<128x128xf32, #tpu.memory_space<vmem>>, %arg8: memref<128x128xf32, #tpu.memory_space<vmem>>, %arg9: memref<1x128xf32, #tpu.memory_space<vmem>>, %arg10: memref<8x128xf32, #tpu.memory_space<vmem>>) attributes {dimension_semantics = [#tpu.dimension_semantics<parallel>], iteration_bounds = array<i64: 1>, scalar_prefetch = 0 : i64, scratch_operands = 0 : i64, tpu.core_type = #tpu.core_type<tc>, window_params = [{transform_indices = @transform_0, window_bounds = array<i64: 8, 128>}, {transform_indices = @transform_1, window_bounds = array<i64: 8, 128>}, {transform_indices = @transform_2, window_bounds = array<i64: 8, 128>}, {pipeline_mode = #tpu.pipeline_mode<synchronous>, transform_indices = @transform_3, window_bounds = array<i64: 128, 128>}, {pipeline_mode = #tpu.pipeline_mode<synchronous>, transform_indices = @transform_4, window_bounds = array<i64: 128, 128>}, {pipeline_mode = #tpu.pipeline_mode<synchronous>, transform_indices = @transform_5, window_bounds = array<i64: 1, 128>}, {pipeline_mode = #tpu.pipeline_mode<synchronous>, transform_indices = @transform_6, window_bounds = array<i64: 128, 128>}, {pipeline_mode = #tpu.pipeline_mode<synchronous>, transform_indices = @transform_7, window_bounds = array<i64: 128, 128>}, {pipeline_mode = #tpu.pipeline_mode<synchronous>, transform_indices = @transform_8, window_bounds = array<i64: 1, 128>}, {transform_indices = @transform_9, window_bounds = array<i64: 8, 128>}]} {
    %c0 = arith.constant 0 : index
    %c0_0 = arith.constant 0 : index
    %0 = vector.load %arg1[%c0, %c0_0] : memref<8x128xf32, #tpu.memory_space<vmem>>, vector<8x128xf32>
    %c0_1 = arith.constant 0 : index
    %c0_2 = arith.constant 0 : index
    %1 = vector.load %arg2[%c0_1, %c0_2] : memref<8x128xf32, #tpu.memory_space<vmem>>, vector<8x128xf32>
    %c0_3 = arith.constant 0 : index
    %c0_4 = arith.constant 0 : index
    %2 = vector.load %arg3[%c0_3, %c0_4] : memref<8x128xf32, #tpu.memory_space<vmem>>, vector<8x128xf32>
    %c0_5 = arith.constant 0 : index
    %c0_6 = arith.constant 0 : index
    %3 = vector.load %arg4[%c0_5, %c0_6] : memref<128x128xf32, #tpu.memory_space<vmem>>, vector<128x128xf32>
    %cst = arith.constant dense<0.000000e+00> : vector<8x128xf32>
    %4 = tpu.matmul %0, %3, %cst {dimension_numbers = #tpu.dot_dimension_numbers<[1], [0], [0], [1], [0, 0, 1, 1], [], []>} : vector<8x128xf32>, vector<128x128xf32>, vector<8x128xf32> -> vector<8x128xf32>
    %c0_7 = arith.constant 0 : index
    %c0_8 = arith.constant 0 : index
    %5 = vector.load %arg5[%c0_7, %c0_8] : memref<128x128xf32, #tpu.memory_space<vmem>>, vector<128x128xf32>
    %cst_9 = arith.constant dense<0.000000e+00> : vector<8x128xf32>
    %6 = tpu.matmul %1, %5, %cst_9 {dimension_numbers = #tpu.dot_dimension_numbers<[1], [0], [0], [1], [0, 0, 1, 1], [], []>} : vector<8x128xf32>, vector<128x128xf32>, vector<8x128xf32> -> vector<8x128xf32>
    %7 = arith.addf %4, %6 : vector<8x128xf32>
    %c0_10 = arith.constant 0 : index
    %c0_11 = arith.constant 0 : index
    %8 = vector.load %arg6[%c0_10, %c0_11] : memref<1x128xf32, #tpu.memory_space<vmem>>, vector<1x128xf32>
    %9 = vector.broadcast %8 : vector<1x128xf32> to vector<8x128xf32>
    %10 = arith.addf %7, %9 : vector<8x128xf32>
    %11 = arith.negf %10 : vector<8x128xf32>
    %12 = math.exp %11 : vector<8x128xf32>
    %cst_12 = arith.constant 1.000000e+00 : f32
    %13 = vector.broadcast %cst_12 : f32 to vector<8x128xf32>
    %14 = arith.addf %13, %12 : vector<8x128xf32>
    %15 = arith.divf %13, %14 : vector<8x128xf32>
    %16 = arith.subf %0, %1 : vector<8x128xf32>
    %17 = arith.mulf %15, %16 : vector<8x128xf32>
    %18 = arith.addf %1, %17 : vector<8x128xf32>
    %c0_13 = arith.constant 0 : index
    %c0_14 = arith.constant 0 : index
    %19 = vector.load %arg7[%c0_13, %c0_14] : memref<128x128xf32, #tpu.memory_space<vmem>>, vector<128x128xf32>
    %cst_15 = arith.constant dense<0.000000e+00> : vector<8x128xf32>
    %20 = tpu.matmul %18, %19, %cst_15 {dimension_numbers = #tpu.dot_dimension_numbers<[1], [0], [0], [1], [0, 0, 1, 1], [], []>} : vector<8x128xf32>, vector<128x128xf32>, vector<8x128xf32> -> vector<8x128xf32>
    %c0_16 = arith.constant 0 : index
    %c0_17 = arith.constant 0 : index
    %21 = vector.load %arg8[%c0_16, %c0_17] : memref<128x128xf32, #tpu.memory_space<vmem>>, vector<128x128xf32>
    %cst_18 = arith.constant dense<0.000000e+00> : vector<8x128xf32>
    %22 = tpu.matmul %2, %21, %cst_18 {dimension_numbers = #tpu.dot_dimension_numbers<[1], [0], [0], [1], [0, 0, 1, 1], [], []>} : vector<8x128xf32>, vector<128x128xf32>, vector<8x128xf32> -> vector<8x128xf32>
    %23 = arith.addf %20, %22 : vector<8x128xf32>
    %c0_19 = arith.constant 0 : index
    %c0_20 = arith.constant 0 : index
    %24 = vector.load %arg9[%c0_19, %c0_20] : memref<1x128xf32, #tpu.memory_space<vmem>>, vector<1x128xf32>
    %25 = vector.broadcast %24 : vector<1x128xf32> to vector<8x128xf32>
    %26 = arith.addf %23, %25 : vector<8x128xf32>
    %27 = arith.negf %26 : vector<8x128xf32>
    %28 = math.exp %27 : vector<8x128xf32>
    %cst_21 = arith.constant 1.000000e+00 : f32
    %29 = vector.broadcast %cst_21 : f32 to vector<8x128xf32>
    %30 = arith.addf %29, %28 : vector<8x128xf32>
    %31 = arith.divf %29, %30 : vector<8x128xf32>
    %32 = arith.subf %18, %2 : vector<8x128xf32>
    %33 = arith.mulf %31, %32 : vector<8x128xf32>
    %34 = arith.addf %2, %33 : vector<8x128xf32>
    %c0_22 = arith.constant 0 : index
    %c0_23 = arith.constant 0 : index
    %35 = vector.load %arg10[%c0_22, %c0_23] : memref<8x128xf32, #tpu.memory_space<vmem>>, vector<8x128xf32>
    tpu.vector_store %arg10[%c0_22, %c0_23], %34 {strides = array<i32>} : memref<8x128xf32, #tpu.memory_space<vmem>>, vector<8x128xf32>,
    return
  }
  func.func @transform_0(%arg0: i32) -> (i32, i32) {
    %c0_i32 = arith.constant 0 : i32
    %c0_i32_0 = arith.constant 0 : i32
    return %arg0, %c0_i32 : i32, i32
  }
  func.func @transform_1(%arg0: i32) -> (i32, i32) {
    %c0_i32 = arith.constant 0 : i32
    %c0_i32_0 = arith.constant 0 : i32
    return %arg0, %c0_i32 : i32, i32
  }
  func.func @transform_2(%arg0: i32) -> (i32, i32) {
    %c0_i32 = arith.constant 0 : i32
    %c0_i32_0 = arith.constant 0 : i32
    return %arg0, %c0_i32 : i32, i32
  }
  func.func @transform_3(%arg0: i32) -> (i32, i32) {
    %c0_i32 = arith.constant 0 : i32
    %c0_i32_0 = arith.constant 0 : i32
    %c0_i32_1 = arith.constant 0 : i32
    return %c0_i32, %c0_i32_0 : i32, i32
  }
  func.func @transform_4(%arg0: i32) -> (i32, i32) {
    %c0_i32 = arith.constant 0 : i32
    %c0_i32_0 = arith.constant 0 : i32
    %c0_i32_1 = arith.constant 0 : i32
    return %c0_i32, %c0_i32_0 : i32, i32
  }
  func.func @transform_5(%arg0: i32) -> (i32, i32) {
    %c0_i32 = arith.constant 0 : i32
    %c0_i32_0 = arith.constant 0 : i32
    %c0_i32_1 = arith.constant 0 : i32
    return %c0_i32, %c0_i32_0 : i32, i32
  }
  func.func @transform_6(%arg0: i32) -> (i32, i32) {
    %c0_i32 = arith.constant 0 : i32
    %c0_i32_0 = arith.constant 0 : i32
    %c0_i32_1 = arith.constant 0 : i32
    return %c0_i32, %c0_i32_0 : i32, i32
  }
  func.func @transform_7(%arg0: i32) -> (i32, i32) {
    %c0_i32 = arith.constant 0 : i32
    %c0_i32_0 = arith.constant 0 : i32
    %c0_i32_1 = arith.constant 0 : i32
    return %c0_i32, %c0_i32_0 : i32, i32
  }
  func.func @transform_8(%arg0: i32) -> (i32, i32) {
    %c0_i32 = arith.constant 0 : i32
    %c0_i32_0 = arith.constant 0 : i32
    %c0_i32_1 = arith.constant 0 : i32
    return %c0_i32, %c0_i32_0 : i32, i32
  }
  func.func @transform_9(%arg0: i32) -> (i32, i32) {
    %c0_i32 = arith.constant 0 : i32
    %c0_i32_0 = arith.constant 0 : i32
    return %arg0, %c0_i32 : i32, i32
  }
}

</mosaic_0001>

<llo_original>
// kernel: tpu_custom_call.1
$region0: #{tpu_custom_call.1}
  #allocation0 [shape = 'u32[]', space=smem, size = 0x4, offset = 0x4, fixed_abs, tag = 'smem constant byte address 0x4 - core index']
  #allocation1 [shape = 'u32[144,128]{1,0:T(1,128)}', space=vmem, size = 0x12000, scoped, tag = 'internal scratch']
  %s0 = inlined_call_operand.hbm [shape: f32[8,128], index: 0, kind: input, shape index: {}]
  %s1 = inlined_call_operand.hbm [shape: f32[8,128], index: 1, kind: input, shape index: {}]
  %s2 = inlined_call_operand.hbm [shape: f32[8,128], index: 2, kind: input, shape index: {}]
  %s3 = inlined_call_operand.hbm [shape: f32[128,128], index: 3, kind: input, shape index: {}]
  %s4 = inlined_call_operand.hbm [shape: f32[128,128], index: 4, kind: input, shape index: {}]
  %s5 = inlined_call_operand.vmem [shape: f32[1,128], index: 5, kind: input, shape index: {}]
  %s6 = inlined_call_operand.hbm [shape: f32[128,128], index: 6, kind: input, shape index: {}]
  %s7 = inlined_call_operand.hbm [shape: f32[128,128], index: 7, kind: input, shape index: {}]
  %s8 = inlined_call_operand.vmem [shape: f32[1,128], index: 8, kind: input, shape index: {}]
  %s9 = inlined_call_operand.hbm [shape: f32[8,128], index: 9, kind: output, shape index: {}]
  %s10 = sld [smem:[#allocation0]]
  $region74: #{tpu_custom_call.1} parent=0
    _
  %s12 = ssub.s32 1, %s10
  %s13 = scalar_select 0, %s12, %s10
  $region1: #{tpu_custom_call.1} parent=0
    #allocation2 [shape = 'u8[4096]{0}', space=vmem, size = 0x1000, scoped, tag = 'input window, operand 0, single buffered']
    #allocation3 [shape = 's32[1]{0}', space=sflag, size = 0x4, scoped, tag = 'scoped memory for tpu_custom_call.1']
    #allocation4 [shape = 's32[1]{0}', space=sflag, size = 0x4, scoped, tag = 'scoped memory for tpu_custom_call.1']
    #allocation5 [shape = 'u8[4096]{0}', space=vmem, size = 0x1000, scoped, tag = 'input window, operand 1, single buffered']
    #allocation6 [shape = 's32[1]{0}', space=sflag, size = 0x4, scoped, tag = 'scoped memory for tpu_custom_call.1']
    #allocation7 [shape = 'u8[4096]{0}', space=vmem, size = 0x1000, scoped, tag = 'input window, operand 2, single buffered']
    #allocation8 [shape = 'u8[65536]{0}', space=vmem, size = 0x10000, scoped, tag = 'input window, operand 3, single buffered']
    #allocation9 [shape = 's32[1]{0}', space=sflag, size = 0x4, scoped, tag = 'scoped memory for tpu_custom_call.1']
    #allocation10 [shape = 'u8[65536]{0}', space=vmem, size = 0x10000, scoped, tag = 'input window, operand 4, single buffered']
    #allocation11 [shape = 'u8[65536]{0}', space=vmem, size = 0x10000, scoped, tag = 'input window, operand 6, single buffered']
    #allocation12 [shape = 's32[1]{0}', space=sflag, size = 0x4, scoped, tag = 'scoped memory for tpu_custom_call.1']
    #allocation13 [shape = 'u8[65536]{0}', space=vmem, size = 0x10000, scoped, tag = 'input window, operand 7, single buffered']
    #allocation14 [shape = 'u8[4096]{0}', space=vmem, size = 0x1000, scoped, tag = 'output window, operand 0, single buffered']
    %14 = vsyncpa [#allocation3], 0
    %15 = vsyncpa [#allocation6], 0
    %16 = vsyncpa [#allocation9], 0
    %17 = vsyncpa [#allocation12], 0
    %18 = vsyncpa [#allocation4], 0
    // Predicated region
    $region2: #{tpu_custom_call.1} parent=1 // pred_check
      _
    $region3: #{tpu_custom_call.1} parent=1 // pred_check_branch
      %20 = sbr.rel (0) target = $region5
    $region4: #{tpu_custom_call.1} parent=1 // pred_region
      %s22 = ssub.s32 128, 128
      %23 = vsyncadd [#allocation3], %s22
      %s25 = sshll.u32 [#allocation2], 4
      %s26 = int_to_ptr.vmem [resolvable:$true] %s25
      %28 = dma.hbm_to_vmem [thread:$0]  %s0, 128, %s26, [#allocation3]
    $region5: #{tpu_custom_call.1} parent=1 // pred_fallthru
      _
    // Predicated region
    $region6: #{tpu_custom_call.1} parent=1 // pred_check
      _
    $region7: #{tpu_custom_call.1} parent=1 // pred_check_branch
      %30 = sbr.rel (0) target = $region9
    $region8: #{tpu_custom_call.1} parent=1 // pred_region
      %s32 = ssub.s32 128, 128
      %33 = vsyncadd [#allocation6], %s32
      %s35 = sshll.u32 [#allocation5], 4
      %s36 = int_to_ptr.vmem [resolvable:$true] %s35
      %38 = dma.hbm_to_vmem [thread:$0]  %s1, 128, %s36, [#allocation6]
    $region9: #{tpu_custom_call.1} parent=1 // pred_fallthru
      _
    // Predicated region
    $region10: #{tpu_custom_call.1} parent=1 // pred_check
      _
    $region11: #{tpu_custom_call.1} parent=1 // pred_check_branch
      %40 = sbr.rel (0) target = $region13
    $region12: #{tpu_custom_call.1} parent=1 // pred_region
      %s42 = ssub.s32 128, 128
      %43 = vsyncadd [#allocation6], %s42
      %s45 = sshll.u32 [#allocation7], 4
      %s46 = int_to_ptr.vmem [resolvable:$true] %s45
      %48 = dma.hbm_to_vmem [thread:$0]  %s2, 128, %s46, [#allocation6]
    $region13: #{tpu_custom_call.1} parent=1 // pred_fallthru
      _
    // Predicated region
    $region14: #{tpu_custom_call.1} parent=1 // pred_check
      _
    $region15: #{tpu_custom_call.1} parent=1 // pred_check_branch
      %50 = sbr.rel (0) target = $region17
    $region16: #{tpu_custom_call.1} parent=1 // pred_region
      %s52 = ssub.s32 2048, 2048
      %53 = vsyncadd [#allocation9], %s52
      %s54 = sshll.u32 [#allocation8], 4
      %s55 = int_to_ptr.vmem [resolvable:$true] %s54
      %60 = dma.hbm_to_vmem [thread:$0]  %s3, 2048, %s55, [#allocation9], 128, 128, 8
    $region17: #{tpu_custom_call.1} parent=1 // pred_fallthru
      _
    // Predicated region
    $region18: #{tpu_custom_call.1} parent=1 // pred_check
      _
    $region19: #{tpu_custom_call.1} parent=1 // pred_check_branch
      %62 = sbr.rel (0) target = $region21
    $region20: #{tpu_custom_call.1} parent=1 // pred_region
      %s64 = ssub.s32 2048, 2048
      %65 = vsyncadd [#allocation9], %s64
      %s66 = sshll.u32 [#allocation10], 4
      %s67 = int_to_ptr.vmem [resolvable:$true] %s66
      %72 = dma.hbm_to_vmem [thread:$0]  %s4, 2048, %s67, [#allocation9], 128, 128, 8
    $region21: #{tpu_custom_call.1} parent=1 // pred_fallthru
      _
    // Predicated region
    $region22: #{tpu_custom_call.1} parent=1 // pred_check
      _
    $region23: #{tpu_custom_call.1} parent=1 // pred_check_branch
      %74 = sbr.rel (0) target = $region25
    $region24: #{tpu_custom_call.1} parent=1 // pred_region
      _
    $region25: #{tpu_custom_call.1} parent=1 // pred_fallthru
      _
    // Predicated region
    $region26: #{tpu_custom_call.1} parent=1 // pred_check
      _
    $region27: #{tpu_custom_call.1} parent=1 // pred_check_branch
      %76 = sbr.rel (0) target = $region29
    $region28: #{tpu_custom_call.1} parent=1 // pred_region
      %s78 = ssub.s32 2048, 2048
      %79 = vsyncadd [#allocation12], %s78
      %s80 = sshll.u32 [#allocation11], 4
      %s81 = int_to_ptr.vmem [resolvable:$true] %s80
      %86 = dma.hbm_to_vmem [thread:$0]  %s6, 2048, %s81, [#allocation12], 128, 128, 8
    $region29: #{tpu_custom_call.1} parent=1 // pred_fallthru
      _
    // Predicated region
    $region30: #{tpu_custom_call.1} parent=1 // pred_check
      _
    $region31: #{tpu_custom_call.1} parent=1 // pred_check_branch
      %88 = sbr.rel (0) target = $region33
    $region32: #{tpu_custom_call.1} parent=1 // pred_region
      %s90 = ssub.s32 2048, 2048
      %91 = vsyncadd [#allocation12], %s90
      %s92 = sshll.u32 [#allocation13], 4
      %s93 = int_to_ptr.vmem [resolvable:$true] %s92
      %98 = dma.hbm_to_vmem [thread:$0]  %s7, 2048, %s93, [#allocation12], 128, 128, 8
    $region33: #{tpu_custom_call.1} parent=1 // pred_fallthru
      _
    // Predicated region
    $region34: #{tpu_custom_call.1} parent=1 // pred_check
      _
    $region35: #{tpu_custom_call.1} parent=1 // pred_check_branch
      %100 = sbr.rel (0) target = $region37
    $region36: #{tpu_custom_call.1} parent=1 // pred_region
      _
    $region37: #{tpu_custom_call.1} parent=1 // pred_fallthru
      _
    // Predicated region
    $region38: #{tpu_custom_call.1} parent=1 // pred_check
      _
    $region39: #{tpu_custom_call.1} parent=1 // pred_check_branch
      %102 = sbr.rel (0) target = $region41
    $region40: #{tpu_custom_call.1} parent=1 // pred_region
      %103 = dma.done [#allocation3], 128
    $region41: #{tpu_custom_call.1} parent=1 // pred_fallthru
      _
    // Predicated region
    $region42: #{tpu_custom_call.1} parent=1 // pred_check
      _
    $region43: #{tpu_custom_call.1} parent=1 // pred_check_branch
      %105 = sbr.rel (0) target = $region45
    $region44: #{tpu_custom_call.1} parent=1 // pred_region
      %106 = dma.done [#allocation6], 128
    $region45: #{tpu_custom_call.1} parent=1 // pred_fallthru
      _
    // Predicated region
    $region46: #{tpu_custom_call.1} parent=1 // pred_check
      _
    $region47: #{tpu_custom_call.1} parent=1 // pred_check_branch
      %108 = sbr.rel (0) target = $region49
    $region48: #{tpu_custom_call.1} parent=1 // pred_region
      %109 = dma.done [#allocation6], 128
    $region49: #{tpu_custom_call.1} parent=1 // pred_fallthru
      _
    // Predicated region
    $region50: #{tpu_custom_call.1} parent=1 // pred_check
      _
    $region51: #{tpu_custom_call.1} parent=1 // pred_check_branch
      %111 = sbr.rel (0) target = $region53
    $region52: #{tpu_custom_call.1} parent=1 // pred_region
      %112 = dma.done [#allocation9], 2048
    $region53: #{tpu_custom_call.1} parent=1 // pred_fallthru
      _
    // Predicated region
    $region54: #{tpu_custom_call.1} parent=1 // pred_check
      _
    $region55: #{tpu_custom_call.1} parent=1 // pred_check_branch
      %114 = sbr.rel (0) target = $region57
    $region56: #{tpu_custom_call.1} parent=1 // pred_region
      %115 = dma.done [#allocation9], 2048
    $region57: #{tpu_custom_call.1} parent=1 // pred_fallthru
      _
    // Predicated region
    $region58: #{tpu_custom_call.1} parent=1 // pred_check
      _
    $region59: #{tpu_custom_call.1} parent=1 // pred_check_branch
      %117 = sbr.rel (0) target = $region61
    $region60: #{tpu_custom_call.1} parent=1 // pred_region
      %118 = dma.done [#allocation12], 2048
    $region61: #{tpu_custom_call.1} parent=1 // pred_fallthru
      _
    // Predicated region
    $region62: #{tpu_custom_call.1} parent=1 // pred_check
      _
    $region63: #{tpu_custom_call.1} parent=1 // pred_check_branch
      %120 = sbr.rel (0) target = $region65
    $region64: #{tpu_custom_call.1} parent=1 // pred_region
      %121 = dma.done [#allocation12], 2048
    $region65: #{tpu_custom_call.1} parent=1 // pred_fallthru
      _
    %v122 = vld [vmem:[#allocation2] sm:$0xff]
    %v123 = vld [vmem:[#allocation5] sm:$0xff]
    %v124 = vld [vmem:[#allocation7] sm:$0xff]
    %v125 = vld [vmem:[#allocation8] sm:$0xff]
    %v126 = vld [vmem:[#allocation8 + $0x8] sm:$0xff]
    %v127 = vld [vmem:[#allocation8 + $0x10] sm:$0xff]
    %v128 = vld [vmem:[#allocation8 + $0x18] sm:$0xff]
    %v129 = vld [vmem:[#allocation8 + $0x20] sm:$0xff]
    %v130 = vld [vmem:[#allocation8 + $0x28] sm:$0xff]
    %v131 = vld [vmem:[#allocation8 + $0x30] sm:$0xff]
    %v132 = vld [vmem:[#allocation8 + $0x38] sm:$0xff]
    %v133 = vld [vmem:[#allocation8 + $0x40] sm:$0xff]
    %v134 = vld [vmem:[#allocation8 + $0x48] sm:$0xff]
    %v135 = vld [vmem:[#allocation8 + $0x50] sm:$0xff]
    %v136 = vld [vmem:[#allocation8 + $0x58] sm:$0xff]
    %v137 = vld [vmem:[#allocation8 + $0x60] sm:$0xff]
    %v138 = vld [vmem:[#allocation8 + $0x68] sm:$0xff]
    %v139 = vld [vmem:[#allocation8 + $0x70] sm:$0xff]
    %v140 = vld [vmem:[#allocation8 + $0x78] sm:$0xff]
    %v141 = vld [vmem:[#allocation10] sm:$0xff]
    %v142 = vld [vmem:[#allocation10 + $0x8] sm:$0xff]
    %v143 = vld [vmem:[#allocation10 + $0x10] sm:$0xff]
    %v144 = vld [vmem:[#allocation10 + $0x18] sm:$0xff]
    %v145 = vld [vmem:[#allocation10 + $0x20] sm:$0xff]
    %v146 = vld [vmem:[#allocation10 + $0x28] sm:$0xff]
    %v147 = vld [vmem:[#allocation10 + $0x30] sm:$0xff]
    %v148 = vld [vmem:[#allocation10 + $0x38] sm:$0xff]
    %v149 = vld [vmem:[#allocation10 + $0x40] sm:$0xff]
    %v150 = vld [vmem:[#allocation10 + $0x48] sm:$0xff]
    %v151 = vld [vmem:[#allocation10 + $0x50] sm:$0xff]
    %v152 = vld [vmem:[#allocation10 + $0x58] sm:$0xff]
    %v153 = vld [vmem:[#allocation10 + $0x60] sm:$0xff]
    %v154 = vld [vmem:[#allocation10 + $0x68] sm:$0xff]
    %v155 = vld [vmem:[#allocation10 + $0x70] sm:$0xff]
    %v156 = vld [vmem:[#allocation10 + $0x78] sm:$0xff]
    %157 = vmatprep.subr.mxu0 0.0
    %158 = vmatpush1.msra.mxu0 %v156
    %159 = vmatprep.subr.mxu0 0.0
    %160 = vmatpush1.msra.mxu0 %v155
    %161 = vmatprep.subr.mxu0 0.0
    %162 = vmatpush1.msra.mxu0 %v154
    %163 = vmatprep.subr.mxu0 0.0
    %164 = vmatpush1.msra.mxu0 %v153
    %165 = vmatprep.subr.mxu0 0.0
    %166 = vmatpush1.msra.mxu0 %v152
    %167 = vmatprep.subr.mxu0 0.0
    %168 = vmatpush1.msra.mxu0 %v151
    %169 = vmatprep.subr.mxu0 0.0
    %170 = vmatpush1.msra.mxu0 %v150
    %171 = vmatprep.subr.mxu0 0.0
    %172 = vmatpush1.msra.mxu0 %v149
    %173 = vmatprep.subr.mxu0 0.0
    %174 = vmatpush1.msra.mxu0 %v148
    %175 = vmatprep.subr.mxu0 0.0
    %176 = vmatpush1.msra.mxu0 %v147
    %177 = vmatprep.subr.mxu0 0.0
    %178 = vmatpush1.msra.mxu0 %v146
    %179 = vmatprep.subr.mxu0 0.0
    %180 = vmatpush1.msra.mxu0 %v145
    %181 = vmatprep.subr.mxu0 0.0
    %182 = vmatpush1.msra.mxu0 %v144
    %183 = vmatprep.subr.mxu0 0.0
    %184 = vmatpush1.msra.mxu0 %v143
    %185 = vmatprep.subr.mxu0 0.0
    %186 = vmatpush1.msra.mxu0 %v142
    %187 = vmatprep.subr.mxu0 0.0
    %188 = vmatpush1.msra.mxu0 %v141
    %189 = vmatprep.subr.mxu0 0.0
    %190 = vmatpush2.msra.mxu0 0.0
    %191 = vmatprep.subr.mxu0 0.0
    %192 = vmatpush2.msra.mxu0 0.0
    %193 = vmatprep.subr.mxu0 0.0
    %194 = vmatpush2.msra.mxu0 0.0
    %195 = vmatprep.subr.mxu0 0.0
    %196 = vmatpush2.msra.mxu0 0.0
    %197 = vmatprep.subr.mxu0 0.0
    %198 = vmatpush2.msra.mxu0 0.0
    %199 = vmatprep.subr.mxu0 0.0
    %200 = vmatpush2.msra.mxu0 0.0
    %201 = vmatprep.subr.mxu0 0.0
    %202 = vmatpush2.msra.mxu0 0.0
    %203 = vmatprep.subr.mxu0 0.0
    %204 = vmatpush2.msra.mxu0 0.0
    %205 = vmatprep.subr.mxu0 0.0
    %206 = vmatpush2.msra.mxu0 0.0
    %207 = vmatprep.subr.mxu0 0.0
    %208 = vmatpush2.msra.mxu0 0.0
    %209 = vmatprep.subr.mxu0 0.0
    %210 = vmatpush2.msra.mxu0 0.0
    %211 = vmatprep.subr.mxu0 0.0
    %212 = vmatpush2.msra.mxu0 0.0
    %213 = vmatprep.subr.mxu0 0.0
    %214 = vmatpush2.msra.mxu0 0.0
    %215 = vmatprep.subr.mxu0 0.0
    %216 = vmatpush2.msra.mxu0 0.0
    %217 = vmatprep.subr.mxu0 0.0
    %218 = vmatpush2.msra.mxu0 0.0
    %219 = vmatprep.subr.mxu0 0.0
    %220 = vmatpush2.msra.mxu0 0.0
    %221 = vmatprep.mubr.f32.mxu0 0.0
    %222 = vmatmul.mubr.f32.gmra.mxu0 %v123
    %v223 = vpop.f32.mrf.mxu0
    %v224 = vadd.f32 0.0, %v223
    %v225 = vpop.f32.mrf.mxu0
    %226 = vdwg.mxu0
    %227 = vmatprep.subr.mxu0 0.0
    %228 = vmatpush1.msra.mxu0 %v140
    %229 = vmatprep.subr.mxu0 0.0
    %230 = vmatpush1.msra.mxu0 %v139
    %231 = vmatprep.subr.mxu0 0.0
    %232 = vmatpush1.msra.mxu0 %v138
    %233 = vmatprep.subr.mxu0 0.0
    %234 = vmatpush1.msra.mxu0 %v137
    %235 = vmatprep.subr.mxu0 0.0
    %236 = vmatpush1.msra.mxu0 %v136
    %237 = vmatprep.subr.mxu0 0.0
    %238 = vmatpush1.msra.mxu0 %v135
    %239 = vmatprep.subr.mxu0 0.0
    %240 = vmatpush1.msra.mxu0 %v134
    %241 = vmatprep.subr.mxu0 0.0
    %242 = vmatpush1.msra.mxu0 %v133
    %243 = vmatprep.subr.mxu0 0.0
    %244 = vmatpush1.msra.mxu0 %v132
    %245 = vmatprep.subr.mxu0 0.0
    %246 = vmatpush1.msra.mxu0 %v131
    %247 = vmatprep.subr.mxu0 0.0
    %248 = vmatpush1.msra.mxu0 %v130
    %249 = vmatprep.subr.mxu0 0.0
    %250 = vmatpush1.msra.mxu0 %v129
    %251 = vmatprep.subr.mxu0 0.0
    %252 = vmatpush1.msra.mxu0 %v128
    %253 = vmatprep.subr.mxu0 0.0
    %254 = vmatpush1.msra.mxu0 %v127
    %255 = vmatprep.subr.mxu0 0.0
    %256 = vmatpush1.msra.mxu0 %v126
    %257 = vmatprep.subr.mxu0 0.0
    %258 = vmatpush1.msra.mxu0 %v125
    %259 = vmatprep.subr.mxu0 0.0
    %260 = vmatpush2.msra.mxu0 0.0
    %261 = vmatprep.subr.mxu0 0.0
    %262 = vmatpush2.msra.mxu0 0.0
    %263 = vmatprep.subr.mxu0 0.0
    %264 = vmatpush2.msra.mxu0 0.0
    %265 = vmatprep.subr.mxu0 0.0
    %266 = vmatpush2.msra.mxu0 0.0
    %267 = vmatprep.subr.mxu0 0.0
    %268 = vmatpush2.msra.mxu0 0.0
    %269 = vmatprep.subr.mxu0 0.0
    %270 = vmatpush2.msra.mxu0 0.0
    %271 = vmatprep.subr.mxu0 0.0
    %272 = vmatpush2.msra.mxu0 0.0
    %273 = vmatprep.subr.mxu0 0.0
    %274 = vmatpush2.msra.mxu0 0.0
    %275 = vmatprep.subr.mxu0 0.0
    %276 = vmatpush2.msra.mxu0 0.0
    %277 = vmatprep.subr.mxu0 0.0
    %278 = vmatpush2.msra.mxu0 0.0
    %279 = vmatprep.subr.mxu0 0.0
    %280 = vmatpush2.msra.mxu0 0.0
    %281 = vmatprep.subr.mxu0 0.0
    %282 = vmatpush2.msra.mxu0 0.0
    %283 = vmatprep.subr.mxu0 0.0
    %284 = vmatpush2.msra.mxu0 0.0
    %285 = vmatprep.subr.mxu0 0.0
    %286 = vmatpush2.msra.mxu0 0.0
    %287 = vmatprep.subr.mxu0 0.0
    %288 = vmatpush2.msra.mxu0 0.0
    %289 = vmatprep.subr.mxu0 0.0
    %290 = vmatpush2.msra.mxu0 0.0
    %291 = vmatprep.mubr.f32.mxu0 0.0
    %292 = vmatmul.mubr.f32.gmra.mxu0 %v122
    %v293 = vpop.f32.mrf.mxu0
    %v294 = vadd.f32 %v224, %v293
    %v295 = vpop.f32.mrf.mxu0
    %296 = vdwg.mxu0
    %v297 = vld [vmem:[%s5] sm:$0x1]
    %v299 = vlaneseq
    %v300 = vshrl.u32 %v299, 7
    %v301 = vsub.s32 0, %v300
    %v302 = vrot.slane %v297, %v301
    %v304 = vadd.f32 %v294, %v302
    %v305 = vxor.u32 %v304, 2147483648
    %v306 = vmul.f32 %v305, 1.442695
    %v307 = vpow.pop %v306
    %v308 = vadd.f32 %v307, 1.0
    %v309 = vrcp.pop %v308
    %v310 = vmul.f32 1.0, %v309
    %v311 = vsub.f32 %v122, %v123
    %v312 = vmul.f32 %v310, %v311
    %v313 = vadd.f32 %v123, %v312
    %v314 = vld [vmem:[#allocation11] sm:$0xff]
    %v315 = vld [vmem:[#allocation11 + $0x8] sm:$0xff]
    %v316 = vld [vmem:[#allocation11 + $0x10] sm:$0xff]
    %v317 = vld [vmem:[#allocation11 + $0x18] sm:$0xff]
    %v318 = vld [vmem:[#allocation11 + $0x20] sm:$0xff]
    %v319 = vld [vmem:[#allocation11 + $0x28] sm:$0xff]
    %v320 = vld [vmem:[#allocation11 + $0x30] sm:$0xff]
    %v321 = vld [vmem:[#allocation11 + $0x38] sm:$0xff]
    %v322 = vld [vmem:[#allocation11 + $0x40] sm:$0xff]
    %v323 = vld [vmem:[#allocation11 + $0x48] sm:$0xff]
    %v324 = vld [vmem:[#allocation11 + $0x50] sm:$0xff]
    %v325 = vld [vmem:[#allocation11 + $0x58] sm:$0xff]
    %v326 = vld [vmem:[#allocation11 + $0x60] sm:$0xff]
    %v327 = vld [vmem:[#allocation11 + $0x68] sm:$0xff]
    %v328 = vld [vmem:[#allocation11 + $0x70] sm:$0xff]
    %v329 = vld [vmem:[#allocation11 + $0x78] sm:$0xff]
    %v330 = vld [vmem:[#allocation13] sm:$0xff]
    %v331 = vld [vmem:[#allocation13 + $0x8] sm:$0xff]
    %v332 = vld [vmem:[#allocation13 + $0x10] sm:$0xff]
    %v333 = vld [vmem:[#allocation13 + $0x18] sm:$0xff]
    %v334 = vld [vmem:[#allocation13 + $0x20] sm:$0xff]
    %v335 = vld [vmem:[#allocation13 + $0x28] sm:$0xff]
    %v336 = vld [vmem:[#allocation13 + $0x30] sm:$0xff]
    %v337 = vld [vmem:[#allocation13 + $0x38] sm:$0xff]
    %v338 = vld [vmem:[#allocation13 + $0x40] sm:$0xff]
    %v339 = vld [vmem:[#allocation13 + $0x48] sm:$0xff]
    %v340 = vld [vmem:[#allocation13 + $0x50] sm:$0xff]
    %v341 = vld [vmem:[#allocation13 + $0x58] sm:$0xff]
    %v342 = vld [vmem:[#allocation13 + $0x60] sm:$0xff]
    %v343 = vld [vmem:[#allocation13 + $0x68] sm:$0xff]
    %v344 = vld [vmem:[#allocation13 + $0x70] sm:$0xff]
    %v345 = vld [vmem:[#allocation13 + $0x78] sm:$0xff]
    %346 = vmatprep.subr.mxu0 0.0
    %347 = vmatpush1.msra.mxu0 %v345
    %348 = vmatprep.subr.mxu0 0.0
    %349 = vmatpush1.msra.mxu0 %v344
    %350 = vmatprep.subr.mxu0 0.0
    %351 = vmatpush1.msra.mxu0 %v343
    %352 = vmatprep.subr.mxu0 0.0
    %353 = vmatpush1.msra.mxu0 %v342
    %354 = vmatprep.subr.mxu0 0.0
    %355 = vmatpush1.msra.mxu0 %v341
    %356 = vmatprep.subr.mxu0 0.0
    %357 = vmatpush1.msra.mxu0 %v340
    %358 = vmatprep.subr.mxu0 0.0
    %359 = vmatpush1.msra.mxu0 %v339
    %360 = vmatprep.subr.mxu0 0.0
    %361 = vmatpush1.msra.mxu0 %v338
    %362 = vmatprep.subr.mxu0 0.0
    %363 = vmatpush1.msra.mxu0 %v337
    %364 = vmatprep.subr.mxu0 0.0
    %365 = vmatpush1.msra.mxu0 %v336
    %366 = vmatprep.subr.mxu0 0.0
    %367 = vmatpush1.msra.mxu0 %v335
    %368 = vmatprep.subr.mxu0 0.0
    %369 = vmatpush1.msra.mxu0 %v334
    %370 = vmatprep.subr.mxu0 0.0
    %371 = vmatpush1.msra.mxu0 %v333
    %372 = vmatprep.subr.mxu0 0.0
    %373 = vmatpush1.msra.mxu0 %v332
    %374 = vmatprep.subr.mxu0 0.0
    %375 = vmatpush1.msra.mxu0 %v331
    %376 = vmatprep.subr.mxu0 0.0
    %377 = vmatpush1.msra.mxu0 %v330
    %378 = vmatprep.subr.mxu0 0.0
    %379 = vmatpush2.msra.mxu0 0.0
    %380 = vmatprep.subr.mxu0 0.0
    %381 = vmatpush2.msra.mxu0 0.0
    %382 = vmatprep.subr.mxu0 0.0
    %383 = vmatpush2.msra.mxu0 0.0
    %384 = vmatprep.subr.mxu0 0.0
    %385 = vmatpush2.msra.mxu0 0.0
    %386 = vmatprep.subr.mxu0 0.0
    %387 = vmatpush2.msra.mxu0 0.0
    %388 = vmatprep.subr.mxu0 0.0
    %389 = vmatpush2.msra.mxu0 0.0
    %390 = vmatprep.subr.mxu0 0.0
    %391 = vmatpush2.msra.mxu0 0.0
    %392 = vmatprep.subr.mxu0 0.0
    %393 = vmatpush2.msra.mxu0 0.0
    %394 = vmatprep.subr.mxu0 0.0
    %395 = vmatpush2.msra.mxu0 0.0
    %396 = vmatprep.subr.mxu0 0.0
    %397 = vmatpush2.msra.mxu0 0.0
    %398 = vmatprep.subr.mxu0 0.0
    %399 = vmatpush2.msra.mxu0 0.0
    %400 = vmatprep.subr.mxu0 0.0
    %401 = vmatpush2.msra.mxu0 0.0
    %402 = vmatprep.subr.mxu0 0.0
    %403 = vmatpush2.msra.mxu0 0.0
    %404 = vmatprep.subr.mxu0 0.0
    %405 = vmatpush2.msra.mxu0 0.0
    %406 = vmatprep.subr.mxu0 0.0
    %407 = vmatpush2.msra.mxu0 0.0
    %408 = vmatprep.subr.mxu0 0.0
    %409 = vmatpush2.msra.mxu0 0.0
    %410 = vmatprep.mubr.f32.mxu0 0.0
    %411 = vmatmul.mubr.f32.gmra.mxu0 %v124
    %v412 = vpop.f32.mrf.mxu0
    %v413 = vadd.f32 0.0, %v412
    %v414 = vpop.f32.mrf.mxu0
    %415 = vdwg.mxu0
    %416 = vmatprep.subr.mxu0 0.0
    %417 = vmatpush1.msra.mxu0 %v329
    %418 = vmatprep.subr.mxu0 0.0
    %419 = vmatpush1.msra.mxu0 %v328
    %420 = vmatprep.subr.mxu0 0.0
    %421 = vmatpush1.msra.mxu0 %v327
    %422 = vmatprep.subr.mxu0 0.0
    %423 = vmatpush1.msra.mxu0 %v326
    %424 = vmatprep.subr.mxu0 0.0
    %425 = vmatpush1.msra.mxu0 %v325
    %426 = vmatprep.subr.mxu0 0.0
    %427 = vmatpush1.msra.mxu0 %v324
    %428 = vmatprep.subr.mxu0 0.0
    %429 = vmatpush1.msra.mxu0 %v323
    %430 = vmatprep.subr.mxu0 0.0
    %431 = vmatpush1.msra.mxu0 %v322
    %432 = vmatprep.subr.mxu0 0.0
    %433 = vmatpush1.msra.mxu0 %v321
    %434 = vmatprep.subr.mxu0 0.0
    %435 = vmatpush1.msra.mxu0 %v320
    %436 = vmatprep.subr.mxu0 0.0
    %437 = vmatpush1.msra.mxu0 %v319
    %438 = vmatprep.subr.mxu0 0.0
    %439 = vmatpush1.msra.mxu0 %v318
    %440 = vmatprep.subr.mxu0 0.0
    %441 = vmatpush1.msra.mxu0 %v317
    %442 = vmatprep.subr.mxu0 0.0
    %443 = vmatpush1.msra.mxu0 %v316
    %444 = vmatprep.subr.mxu0 0.0
    %445 = vmatpush1.msra.mxu0 %v315
    %446 = vmatprep.subr.mxu0 0.0
    %447 = vmatpush1.msra.mxu0 %v314
    %448 = vmatprep.subr.mxu0 0.0
    %449 = vmatpush2.msra.mxu0 0.0
    %450 = vmatprep.subr.mxu0 0.0
    %451 = vmatpush2.msra.mxu0 0.0
    %452 = vmatprep.subr.mxu0 0.0
    %453 = vmatpush2.msra.mxu0 0.0
    %454 = vmatprep.subr.mxu0 0.0
    %455 = vmatpush2.msra.mxu0 0.0
    %456 = vmatprep.subr.mxu0 0.0
    %457 = vmatpush2.msra.mxu0 0.0
    %458 = vmatprep.subr.mxu0 0.0
    %459 = vmatpush2.msra.mxu0 0.0
    %460 = vmatprep.subr.mxu0 0.0
    %461 = vmatpush2.msra.mxu0 0.0
    %462 = vmatprep.subr.mxu0 0.0
    %463 = vmatpush2.msra.mxu0 0.0
    %464 = vmatprep.subr.mxu0 0.0
    %465 = vmatpush2.msra.mxu0 0.0
    %466 = vmatprep.subr.mxu0 0.0
    %467 = vmatpush2.msra.mxu0 0.0
    %468 = vmatprep.subr.mxu0 0.0
    %469 = vmatpush2.msra.mxu0 0.0
    %470 = vmatprep.subr.mxu0 0.0
    %471 = vmatpush2.msra.mxu0 0.0
    %472 = vmatprep.subr.mxu0 0.0
    %473 = vmatpush2.msra.mxu0 0.0
    %474 = vmatprep.subr.mxu0 0.0
    %475 = vmatpush2.msra.mxu0 0.0
    %476 = vmatprep.subr.mxu0 0.0
    %477 = vmatpush2.msra.mxu0 0.0
    %478 = vmatprep.subr.mxu0 0.0
    %479 = vmatpush2.msra.mxu0 0.0
    %480 = vmatprep.mubr.f32.mxu0 0.0
    %481 = vmatmul.mubr.f32.gmra.mxu0 %v313
    %v482 = vpop.f32.mrf.mxu0
    %v483 = vadd.f32 %v413, %v482
    %v484 = vpop.f32.mrf.mxu0
    %485 = vdwg.mxu0
    %v486 = vld [vmem:[%s8] sm:$0x1]
    %v488 = vlaneseq
    %v489 = vshrl.u32 %v488, 7
    %v490 = vsub.s32 0, %v489
    %v491 = vrot.slane %v486, %v490
    %v493 = vadd.f32 %v483, %v491
    %v494 = vxor.u32 %v493, 2147483648
    %v495 = vmul.f32 %v494, 1.442695
    %v496 = vpow.pop %v495
    %v497 = vadd.f32 %v496, 1.0
    %v498 = vrcp.pop %v497
    %v499 = vmul.f32 1.0, %v498
    %v500 = vsub.f32 %v313, %v124
    %v501 = vmul.f32 %v499, %v500
    %v502 = vadd.f32 %v124, %v501
    %503 = vst [vmem:[#allocation14] sm:$0xff] %v502
    // Predicated region
    $region66: #{tpu_custom_call.1} parent=1 // pred_check
      _
    $region67: #{tpu_custom_call.1} parent=1 // pred_check_branch
      %505 = sbr.rel (0) target = $region69
    $region68: #{tpu_custom_call.1} parent=1 // pred_region
      %s507 = ssub.s32 128, 128
      %508 = vsyncadd [#allocation4], %s507
      %s510 = sshll.u32 [#allocation14], 4
      %s511 = int_to_ptr.vmem [resolvable:$true] %s510
      %513 = dma.vmem_to_hbm [thread:$0]  %s511, 128, %s9, [#allocation4]
    $region69: #{tpu_custom_call.1} parent=1 // pred_fallthru
      _
    // Predicated region
    $region70: #{tpu_custom_call.1} parent=1 // pred_check
      _
    $region71: #{tpu_custom_call.1} parent=1 // pred_check_branch
      %515 = sbr.rel (0) target = $region73
    $region72: #{tpu_custom_call.1} parent=1 // pred_region
      %516 = dma.done [#allocation4], 128
    $region73: #{tpu_custom_call.1} parent=1 // pred_fallthru
      _
    %517 = vsyncpa [#allocation3], 1
    %518 = vsyncpa [#allocation6], 1
    %519 = vsyncpa [#allocation9], 1
    %520 = vsyncpa [#allocation12], 1
    %521 = vsyncpa [#allocation4], 1

</llo_original>
